<compile_context>
chip_gen: v7x
topology: tpu7x:2x2x1
jax: 0.10.0
libtpu: 0.0.40
codegen_flags: <defaults>
</compile_context>

<pallas_src>
import jax
import jax.numpy as jnp
import numpy as np
from jax import lax
from jax.experimental import pallas as pl
from jax.experimental.pallas import tpu as pltpu


def _phase_matmul_relu_kernel(p_ref, w_ref, b_ref, o_ref):
    """relu(W @ P + b) for one lane-dense pixel tile.

    p_ref: (E, PT)  im2col patch tile (E = Kh*Kh*Cin, PT pixels on lanes)
    w_ref: (R, E)   phase-combined weight (R = 4*Cout), grid-resident
    b_ref: (R, 1)   per-output-row bias, grid-resident
    o_ref: (R, PT)  lane-dense output tile
    """
    # Contraction on the (otherwise idle) MXU slot.  HIGHEST keeps full f32
    # accuracy against the HIGHEST-precision reference; with E=16 the extra
    # passes are a handful of vmatmul pushes and stay off the VALU.
    acc = jnp.dot(w_ref[...], p_ref[...],
                  preferred_element_type=jnp.float32,
                  precision=jax.lax.Precision.HIGHEST)
    acc = acc + b_ref[...]                      # bias + ReLU: VPU epilogue
    o_ref[...] = jnp.maximum(acc, 0.0).astype(o_ref.dtype)


def _round_up(a, b):
    return (a + b - 1) // b * b


def _tensorcores_per_chip():
    """v7x has 2 TensorCores/chip; v5e/v6e have 1.  Defensive default: 1."""
    try:
        kind = jax.devices()[0].device_kind.lower()
    except Exception:
        return 1
    return 2 if ("v7" in kind or "7x" in kind) else 1


def layer_conv_transpose_forward(x_nchw, w_t, bias):
    """x_nchw: (N, Cin, H, W); w_t: ConvTranspose2d weight (Cin, Cout, K, K);
    bias: (Cout,).  Returns (N, Cout, 2H+K-3, 2W+K-3) NCHW, matching the
    PyTorch module's forward."""
    N, Cin, H, W = x_nchw.shape
    _, Cout, K, _ = w_t.shape
    Ho, Wo = 2 * H + K - 3, 2 * W + K - 3
    Kh = (K + 1) // 2                        # taps per phase per spatial dim
    HU, WU = (Ho + 1) // 2, (Wo + 1) // 2    # per-phase output rows / cols

    # ---- polyphase weight (wrapper-side layout plumbing, fused under jit) --
    # W2[(r,s,o), (m2,n2,c)] = w_t[c, o, r + 2*(Kh-1-m2), s + 2*(Kh-1-n2)]
    # (zero where the tap falls outside the K x K kernel).
    pad_k = 2 * Kh - K
    wpad = jnp.pad(w_t, ((0, 0), (0, 0), (0, pad_k), (0, pad_k)))
    wr = wpad.reshape(Cin, Cout, Kh, 2, Kh, 2)       # [c, o, mm, r, nn, s]
    wrf = jnp.flip(wr, axis=(2, 4))                  # mm -> m2, nn -> n2
    w2 = jnp.transpose(wrf, (3, 5, 1, 2, 4, 0)).reshape(4 * Cout,
                                                        Kh * Kh * Cin)
    b4 = jnp.tile(bias, 4).reshape(4 * Cout, 1)      # bias per output row

    # ---- im2col patches at ORIGINAL resolution (no zero-stuffing) ---------
    # patches[(m2,n2,c), (n,u,v)] = xp[n, c, u + m2, v + n2]
    pb, pr = max(0, HU - H), max(0, WU - W)
    xp = jnp.pad(x_nchw, ((0, 0), (0, 0), (Kh - 1, pb), (Kh - 1, pr)))
    taps = [xp[:, :, m2:m2 + HU, n2:n2 + WU]
            for m2 in range(Kh) for n2 in range(Kh)]  # each (N, Cin, HU, WU)
    pt = jnp.stack(taps, axis=0)                      # (Kh*Kh, N, Cin, HU, WU)
    patches = jnp.transpose(pt, (0, 2, 1, 3, 4)).reshape(Kh * Kh * Cin,
                                                         N * HU * WU)
    # TODO(synk): if the surrounding model runs bf16, feed patches/w2 as bf16
    # (keep preferred_element_type=f32) to halve DMA bytes on v6e/v7x.

    E = Kh * Kh * Cin
    R = 4 * Cout
    PIX = N * HU * WU

    # ---- lane-dense pixel tiling: as few grid steps as possible -----------
    # Per-step overhead (~0.35 us) dominates the tile compute, so use the
    # biggest lane-dense tile up to 2048; on v7x keep >=2 steps so the
    # "parallel" axis shards across both TensorCores.
    MAX_PT = 2048
    cores = _tensorcores_per_chip()
    pix128 = _round_up(PIX, 128)
    min_steps = max(cores, pl.cdiv(pix128, MAX_PT))
    PT = _round_up(pl.cdiv(pix128, min_steps), 128)
    PIXp = _round_up(PIX, PT)
    if PIXp != PIX:
        patches = jnp.pad(patches, ((0, 0), (0, PIXp - PIX)))

    out_mat = pl.pallas_call(
        _phase_matmul_relu_kernel,
        out_shape=jax.ShapeDtypeStruct((R, PIXp), x_nchw.dtype),
        grid_spec=pltpu.PrefetchScalarGridSpec(
            num_scalar_prefetch=0,
            grid=(PIXp // PT,),
            in_specs=[
                pl.BlockSpec((E, PT), lambda i: (0, i)),   # pixel-tiled patches
                pl.BlockSpec((R, E), lambda i: (0, 0)),    # resident weight
                pl.BlockSpec((R, 1), lambda i: (0, 0)),    # resident bias
            ],
            out_specs=pl.BlockSpec((R, PT), lambda i: (0, i)),
        ),
        compiler_params=pltpu.CompilerParams(
            dimension_semantics=("parallel",)),
    )(patches, w2, b4)

    # ---- interleave the 4 phases back to full resolution (fused under jit) -
    out6 = out_mat[:, :PIX].reshape(2, 2, Cout, N, HU, WU)  # [r, s, o, n, u, v]
    out = jnp.transpose(out6, (3, 2, 4, 0, 5, 1)).reshape(
        N, Cout, 2 * HU, 2 * WU)
    return out[:, :, :Ho, :Wo]


def _reference(x_nchw, w_t, bias):
    """Pure-JAX reference of the same forward pass (for sanity checking)."""
    N, Cin, H, W = x_nchw.shape
    _, Cout, K, _ = w_t.shape
    x = jnp.transpose(x_nchw, (0, 2, 3, 1))
    w_conv = jnp.transpose(jnp.flip(w_t, axis=(2, 3)), (2, 3, 0, 1))
    out = lax.conv_general_dilated(
        x, w_conv, window_strides=(1, 1),
        padding=[(K - 1, K - 2), (K - 1, K - 2)],
        lhs_dilation=(2, 2),
        dimension_numbers=("NHWC", "HWIO", "NHWC"),
        precision=jax.lax.Precision.HIGHEST)
    out = jnp.maximum(out + bias[None, None, None, :], 0.0)
    return jnp.transpose(out, (0, 3, 1, 2))


if __name__ == "__main__":
    # batch=2, in_channel=4, out_channel=8, spatial=16x16, kernel_size=3
    # (the module's `stride` ctor arg is unused by its forward).
    N, Cin, Cout, H, W, K = 2, 4, 8, 16, 16, 3

    key = jax.random.PRNGKey(0)
    kx, kw, kb = jax.random.split(key, 3)
    x = jax.random.normal(kx, (N, Cin, H, W), dtype=jnp.float32)

    # Deterministic parameter init (the module's xavier init only targets
    # nn.Conv2d, so the ConvTranspose2d keeps a default init; any
    # deterministic values are fine for exercising the forward pass).
    fan_in, fan_out = Cin * K * K, Cout * K * K
    limit = np.sqrt(6.0 / (fan_in + fan_out))
    w_t = jax.random.uniform(kw, (Cin, Cout, K, K), dtype=jnp.float32,
                             minval=-limit, maxval=limit)
    bias = 0.1 * jax.random.normal(kb, (Cout,), dtype=jnp.float32)

    # Whole forward (im2col plumbing + kernel + phase interleave) under one jit.
    fwd = jax.jit(layer_conv_transpose_forward)
    out = jax.block_until_ready(fwd(x, w_t, bias))
    assert out.shape == (N, Cout, 2 * H + K - 3, 2 * W + K - 3), out.shape

    ref = jax.block_until_ready(_reference(x, w_t, bias))
    np.testing.assert_allclose(np.asarray(out), np.asarray(ref),
                               rtol=1e-4, atol=1e-4)

    print("KERNEL_OK")
</pallas_src>

<mosaic_0001>
module attributes {stable_mosaic.version = 11 : i64} {
  func.func @_phase_matmul_relu_kernel(%arg0: i32, %arg1: memref<16x512xf32, #tpu.memory_space<vmem>>, %arg2: memref<32x16xf32, #tpu.memory_space<vmem>>, %arg3: memref<32x1xf32, #tpu.memory_space<vmem>>, %arg4: memref<32x512xf32, #tpu.memory_space<vmem>>) attributes {dimension_semantics = [#tpu.dimension_semantics<parallel>], iteration_bounds = array<i64: 1>, scalar_prefetch = 0 : i64, scratch_operands = 0 : i64, tpu.core_type = #tpu.core_type<tc>, window_params = [{transform_indices = @transform_0, window_bounds = array<i64: 16, 512>}, {pipeline_mode = #tpu.pipeline_mode<synchronous>, transform_indices = @transform_1, window_bounds = array<i64: 32, 16>}, {pipeline_mode = #tpu.pipeline_mode<synchronous>, transform_indices = @transform_2, window_bounds = array<i64: 32, 1>}, {transform_indices = @transform_3, window_bounds = array<i64: 32, 512>}]} {
    %c0 = arith.constant 0 : index
    %c0_0 = arith.constant 0 : index
    %0 = vector.load %arg2[%c0, %c0_0] : memref<32x16xf32, #tpu.memory_space<vmem>>, vector<32x16xf32>
    %c0_1 = arith.constant 0 : index
    %c0_2 = arith.constant 0 : index
    %1 = vector.load %arg1[%c0_1, %c0_2] : memref<16x512xf32, #tpu.memory_space<vmem>>, vector<16x512xf32>
    %cst = arith.constant dense<0.000000e+00> : vector<32x512xf32>
    %2 = tpu.matmul %0, %1, %cst {dimension_numbers = #tpu.dot_dimension_numbers<[1], [0], [0], [1], [0, 0, 1, 1], [], []>, precision = #tpu.contract_precision<fp32>} : vector<32x16xf32>, vector<16x512xf32>, vector<32x512xf32> -> vector<32x512xf32>
    %c0_3 = arith.constant 0 : index
    %c0_4 = arith.constant 0 : index
    %3 = vector.load %arg3[%c0_3, %c0_4] : memref<32x1xf32, #tpu.memory_space<vmem>>, vector<32x1xf32>
    %4 = vector.broadcast %3 : vector<32x1xf32> to vector<32x512xf32>
    %5 = arith.addf %2, %4 : vector<32x512xf32>
    %cst_5 = arith.constant 0.000000e+00 : f32
    %6 = vector.broadcast %cst_5 : f32 to vector<32x512xf32>
    %7 = arith.maximumf %5, %6 : vector<32x512xf32>
    %c0_6 = arith.constant 0 : index
    %c0_7 = arith.constant 0 : index
    %8 = vector.load %arg4[%c0_6, %c0_7] : memref<32x512xf32, #tpu.memory_space<vmem>>, vector<32x512xf32>
    tpu.vector_store %arg4[%c0_6, %c0_7], %7 {strides = array<i32>} : memref<32x512xf32, #tpu.memory_space<vmem>>, vector<32x512xf32>,
    return
  }
  func.func @transform_0(%arg0: i32) -> (i32, i32) {
    %c0_i32 = arith.constant 0 : i32
    %c0_i32_0 = arith.constant 0 : i32
    return %c0_i32, %arg0 : i32, i32
  }
  func.func @transform_1(%arg0: i32) -> (i32, i32) {
    %c0_i32 = arith.constant 0 : i32
    %c0_i32_0 = arith.constant 0 : i32
    %c0_i32_1 = arith.constant 0 : i32
    return %c0_i32, %c0_i32_0 : i32, i32
  }
  func.func @transform_2(%arg0: i32) -> (i32, i32) {
    %c0_i32 = arith.constant 0 : i32
    %c0_i32_0 = arith.constant 0 : i32
    %c0_i32_1 = arith.constant 0 : i32
    return %c0_i32, %c0_i32_0 : i32, i32
  }
  func.func @transform_3(%arg0: i32) -> (i32, i32) {
    %c0_i32 = arith.constant 0 : i32
    %c0_i32_0 = arith.constant 0 : i32
    return %c0_i32, %arg0 : i32, i32
  }
}

</mosaic_0001>

<llo_original>
// kernel: tile.8
$region0: #{tile.8}
  #allocation0 [shape = 's32[1]{0}', space=sflag, size = 0x4, scoped, tag = 'scoped memory for tile.8']
  %s0 = inlined_call_operand.vmem [shape: f32[8], index: 0, kind: input, shape index: {}]
  %s1 = inlined_call_operand.vmem [shape: f32[4,8], index: 1, kind: output, shape index: {}]
  // Predicated region
  $region2: #{tile.8} parent=0 // pred_check
    _
  $region3: #{tile.8} parent=0 // pred_check_branch
    %3 = sbr.rel (0) target = $region5
  $region4: #{tile.8} parent=0 // pred_region
    _
  $region5: #{tile.8} parent=0 // pred_fallthru
    _
  %v4 = vld [vmem:[%s0] ss:$0 sm:$0xff]
  %5 = vst [vmem:[%s1] sm:$0xf] %v4

// kernel: tile.0
$region0: #{tile.0}
  %s0 = inlined_call_operand.vmem [shape: f32[4,8], index: 0, kind: input, shape index: {}]
  %s1 = inlined_call_operand.vmem [shape: f32[32,1], index: 1, kind: output, shape index: {}]
  $region1: #{tile.0} parent=0
    #allocation0 [shape = 'u8[4096]{0}', space=vmem, size = 0x1000, scoped, tag = 'scoped mem for input reshape']
    %s3 = sshllo.u32 0, 4
    %v4 = vld [vmem:[%s0] sm:%s3]
    %5 = vst [vmem:[#allocation0] sm:%s3] %v4
    %v6 = vld [vmem:[#allocation0] sm:$0xf]
    %vm7 = vcmask 7168
    %8 = vst.msk [vmem:[%s1] ss:$8 sm:$0xf] %vm7, %v6
    %v9 = vld [vmem:[#allocation0] sm:$0xf]
    %10 = vrot.lane.b32.xlu0 %v9, 127
    %v11 = vpop.permute.xlu0 %10
    %vm12 = vcmask 7168
    %s13 = scalar_lea.vmem %s1, 1
    %14 = vst.msk [vmem:[%s13] ss:$8 sm:$0xf] %vm12, %v11
    %v15 = vld [vmem:[#allocation0] sm:$0xf]
    %16 = vrot.lane.b32.xlu0 %v15, 126
    %v17 = vpop.permute.xlu0 %16
    %vm18 = vcmask 7168
    %s19 = scalar_lea.vmem %s1, 2
    %20 = vst.msk [vmem:[%s19] ss:$8 sm:$0xf] %vm18, %v17
    %v21 = vld [vmem:[#allocation0] sm:$0xf]
    %22 = vrot.lane.b32.xlu0 %v21, 125
    %v23 = vpop.permute.xlu0 %22
    %vm24 = vcmask 7168
    %s25 = scalar_lea.vmem %s1, 3
    %26 = vst.msk [vmem:[%s25] ss:$8 sm:$0xf] %vm24, %v23
    %v27 = vld [vmem:[#allocation0] sm:$0xf]
    %28 = vrot.lane.b32.xlu0 %v27, 124
    %v29 = vpop.permute.xlu0 %28
    %vm30 = vcmask 7168
    %s31 = scalar_lea.vmem %s1, 4
    %32 = vst.msk [vmem:[%s31] ss:$8 sm:$0xf] %vm30, %v29
    %v33 = vld [vmem:[#allocation0] sm:$0xf]
    %34 = vrot.lane.b32.xlu0 %v33, 123
    %v35 = vpop.permute.xlu0 %34
    %vm36 = vcmask 7168
    %s37 = scalar_lea.vmem %s1, 5
    %38 = vst.msk [vmem:[%s37] ss:$8 sm:$0xf] %vm36, %v35
    %v39 = vld [vmem:[#allocation0] sm:$0xf]
    %40 = vrot.lane.b32.xlu0 %v39, 122
    %v41 = vpop.permute.xlu0 %40
    %vm42 = vcmask 7168
    %s43 = scalar_lea.vmem %s1, 6
    %44 = vst.msk [vmem:[%s43] ss:$8 sm:$0xf] %vm42, %v41
    %v45 = vld [vmem:[#allocation0] sm:$0xf]
    %46 = vrot.lane.b32.xlu0 %v45, 121
    %v47 = vpop.permute.xlu0 %46
    %vm48 = vcmask 7168
    %s49 = scalar_lea.vmem %s1, 7
    %50 = vst.msk [vmem:[%s49] ss:$8 sm:$0xf] %vm48, %v47

// kernel: layer_conv_transpose_forward.1
$region0: #{layer_conv_transpose_forward.1}
  #allocation0 [shape = 'u32[]', space=smem, size = 0x4, offset = 0x4, fixed_abs, tag = 'smem constant byte address 0x4 - core index']
  #allocation1 [shape = 'u32[144,128]{1,0:T(1,128)}', space=vmem, size = 0x12000, scoped, tag = 'internal scratch']
  %s0 = inlined_call_operand.vmem [shape: f32[16,512], index: 0, kind: input, shape index: {}]
  %s1 = inlined_call_operand.vmem [shape: f32[32,16], index: 1, kind: input, shape index: {}]
  %s2 = inlined_call_operand.vmem [shape: f32[32,1], index: 2, kind: input, shape index: {}]
  %s3 = inlined_call_operand.vmem [shape: f32[32,512], index: 3, kind: output, shape index: {}]
  %s4 = sld [smem:[#allocation0]]
  $region22: #{layer_conv_transpose_forward.1} parent=0
    _
  %s6 = ssub.s32 1, %s4
  %s7 = scalar_select 0, %s6, %s4
  // Predicated region
  $region2: #{layer_conv_transpose_forward.1} parent=0 // pred_check
    _
  $region3: #{layer_conv_transpose_forward.1} parent=0 // pred_check_branch
    %9 = sbr.rel (0) target = $region5
  $region4: #{layer_conv_transpose_forward.1} parent=0 // pred_region
    _
  $region5: #{layer_conv_transpose_forward.1} parent=0 // pred_fallthru
    _
  // Predicated region
  $region6: #{layer_conv_transpose_forward.1} parent=0 // pred_check
    _
  $region7: #{layer_conv_transpose_forward.1} parent=0 // pred_check_branch
    %11 = sbr.rel (0) target = $region9
  $region8: #{layer_conv_transpose_forward.1} parent=0 // pred_region
    _
  $region9: #{layer_conv_transpose_forward.1} parent=0 // pred_fallthru
    _
  // Predicated region
  $region10: #{layer_conv_transpose_forward.1} parent=0 // pred_check
    _
  $region11: #{layer_conv_transpose_forward.1} parent=0 // pred_check_branch
    %13 = sbr.rel (0) target = $region13
  $region12: #{layer_conv_transpose_forward.1} parent=0 // pred_region
    _
  $region13: #{layer_conv_transpose_forward.1} parent=0 // pred_fallthru
    _
  %v14 = vld [vmem:[%s1] sm:$0xff]
  %v15 = vld [vmem:[%s1 + $0x8] sm:$0xff]
  %v16 = vld [vmem:[%s1 + $0x10] sm:$0xff]
  %v17 = vld [vmem:[%s1 + $0x18] sm:$0xff]
  %v18 = vld [vmem:[%s0] sm:$0xff]
  %v19 = vld [vmem:[%s0 + $0x8] sm:$0xff]
  %v20 = vld [vmem:[%s0 + $0x10] sm:$0xff]
  %v21 = vld [vmem:[%s0 + $0x18] sm:$0xff]
  %v22 = vld [vmem:[%s0 + $0x20] sm:$0xff]
  %v23 = vld [vmem:[%s0 + $0x28] sm:$0xff]
  %v24 = vld [vmem:[%s0 + $0x30] sm:$0xff]
  %v25 = vld [vmem:[%s0 + $0x38] sm:$0xff]
  %v26 = vld [vmem:[%s2] sm:$0xff]
  %v27 = vld [vmem:[%s2 + $0x8] sm:$0xff]
  %v28 = vld [vmem:[%s2 + $0x10] sm:$0xff]
  %v29 = vld [vmem:[%s2 + $0x18] sm:$0xff]
  %31 = vset.pattern.permute.xlu0 0
  %32 = vperm.xlu0 %31, %v26
  %v33 = vpop.permute.xlu0 %32
  %36 = vset.pattern.permute.xlu0 0
  %37 = vperm.xlu0 %36, %v27
  %v38 = vpop.permute.xlu0 %37
  %41 = vset.pattern.permute.xlu0 0
  %42 = vperm.xlu0 %41, %v28
  %v43 = vpop.permute.xlu0 %42
  %46 = vset.pattern.permute.xlu0 0
  %47 = vperm.xlu0 %46, %v29
  %v48 = vpop.permute.xlu0 %47
  %vm50 = vcmask 130048
  %v52 = vsel %vm50, %v14, 0
  %v55 = vsel %vm50, %v15, 0
  %v58 = vsel %vm50, %v16, 0
  %v61 = vsel %vm50, %v17, 0
  %v63 = vand.u32 %v19, 4294901760
  %64 = vmatprep.subr.mxu0 %v63
  %v65 = vand.u32 %v18, 4294901760
  %66 = vmatpush1.msra.mxu0 %v65
  %v67 = vand.u32 %v23, 4294901760
  %68 = vmatprep.subr.mxu0 %v67
  %v69 = vand.u32 %v22, 4294901760
  %70 = vmatpush1.msra.mxu0 %v69
  %71 = vmatprep.subr.mxu0 0.0
  %72 = vmatpush1.msra.mxu0 0.0
  %73 = vmatprep.subr.mxu0 0.0
  %74 = vmatpush1.msra.mxu0 0.0
  %75 = vmatprep.subr.mxu0 0.0
  %76 = vmatpush1.msra.mxu0 0.0
  %77 = vmatprep.subr.mxu0 0.0
  %78 = vmatpush1.msra.mxu0 0.0
  %79 = vmatprep.subr.mxu0 0.0
  %80 = vmatpush1.msra.mxu0 0.0
  %81 = vmatprep.subr.mxu0 0.0
  %82 = vmatpush1.msra.mxu0 0.0
  %83 = vmatprep.subr.mxu0 0.0
  %84 = vmatpush1.msra.mxu0 0.0
  %85 = vmatprep.subr.mxu0 0.0
  %86 = vmatpush1.msra.mxu0 0.0
  %87 = vmatprep.subr.mxu0 0.0
  %88 = vmatpush1.msra.mxu0 0.0
  %89 = vmatprep.subr.mxu0 0.0
  %90 = vmatpush1.msra.mxu0 0.0
  %91 = vmatprep.subr.mxu0 0.0
  %92 = vmatpush1.msra.mxu0 0.0
  %93 = vmatprep.subr.mxu0 0.0
  %94 = vmatpush1.msra.mxu0 0.0
  %95 = vmatprep.subr.mxu0 0.0
  %96 = vmatpush1.msra.mxu0 0.0
  %97 = vmatprep.subr.mxu0 0.0
  %98 = vmatpush1.msra.mxu0 0.0
  %99 = vmatprep.subr.mxu0 0.0
  %100 = vmatpush1.msra.mxu0 0.0
  %101 = vmatprep.subr.mxu0 0.0
  %102 = vmatpush1.msra.mxu0 0.0
  %103 = vmatprep.subr.mxu0 0.0
  %104 = vmatpush1.msra.mxu0 0.0
  %105 = vmatprep.subr.mxu0 0.0
  %106 = vmatpush1.msra.mxu0 0.0
  %107 = vmatprep.subr.mxu0 0.0
  %108 = vmatpush1.msra.mxu0 0.0
  %109 = vmatprep.subr.mxu0 0.0
  %110 = vmatpush1.msra.mxu0 0.0
  %111 = vmatprep.subr.mxu0 0.0
  %112 = vmatpush1.msra.mxu0 0.0
  %113 = vmatprep.subr.mxu0 0.0
  %114 = vmatpush1.msra.mxu0 0.0
  %115 = vmatprep.subr.mxu0 0.0
  %116 = vmatpush1.msra.mxu0 0.0
  %117 = vmatprep.subr.mxu0 0.0
  %118 = vmatpush1.msra.mxu0 0.0
  %119 = vmatprep.subr.mxu0 0.0
  %120 = vmatpush1.msra.mxu0 0.0
  %121 = vmatprep.subr.mxu0 0.0
  %122 = vmatpush1.msra.mxu0 0.0
  %123 = vmatprep.subr.mxu0 0.0
  %124 = vmatpush1.msra.mxu0 0.0
  %125 = vmatprep.subr.mxu0 0.0
  %126 = vmatpush1.msra.mxu0 0.0
  %127 = vmatprep.subr.mxu0 0.0
  %128 = vmatpush1.msra.mxu0 0.0
  %129 = vmatprep.subr.mxu0 0.0
  %130 = vmatpush1.msra.mxu0 0.0
  %131 = vmatprep.mubr.f32.mxu0 0.0
  %v132 = vand.u32 %v52, 4294901760
  %v133 = vsub.f32 %v52, %v132
  %v134 = vand.u32 %v133, 4294901760
  %v135 = vsub.f32 %v133, %v134
  %v136 = vand.u32 %v135, 4294901760
  %137 = vmatmul.mubr.f32.gmra.mrb[0].mxu0 %v136
  %v138 = vpop.f32.mrb[0].mxu0
  %v139 = vadd.f32 %v33, %v138
  %v140 = vpop.f32.mrb[0].mxu0
  %v141 = vadd.f32 %v33, %v140
  %142 = vmatprep.mubr.f32.mxu0 0.0
  %v143 = vand.u32 %v55, 4294901760
  %v144 = vsub.f32 %v55, %v143
  %v145 = vand.u32 %v144, 4294901760
  %v146 = vsub.f32 %v144, %v145
  %v147 = vand.u32 %v146, 4294901760
  %148 = vmatmul.mubr.f32.gmra.mrb[0].mxu0 %v147
  %v149 = vpop.f32.mrb[0].mxu0
  %v150 = vadd.f32 %v38, %v149
  %v151 = vpop.f32.mrb[0].mxu0
  %v152 = vadd.f32 %v38, %v151
  %153 = vmatprep.mubr.f32.mxu0 0.0
  %v154 = vand.u32 %v58, 4294901760
  %v155 = vsub.f32 %v58, %v154
  %v156 = vand.u32 %v155, 4294901760
  %v157 = vsub.f32 %v155, %v156
  %v158 = vand.u32 %v157, 4294901760
  %159 = vmatmul.mubr.f32.gmra.mrb[0].mxu0 %v158
  %v160 = vpop.f32.mrb[0].mxu0
  %v161 = vadd.f32 %v43, %v160
  %v162 = vpop.f32.mrb[0].mxu0
  %v163 = vadd.f32 %v43, %v162
  %164 = vmatprep.mubr.f32.mxu0 0.0
  %v165 = vand.u32 %v61, 4294901760
  %v166 = vsub.f32 %v61, %v165
  %v167 = vand.u32 %v166, 4294901760
  %v168 = vsub.f32 %v166, %v167
  %v169 = vand.u32 %v168, 4294901760
  %170 = vmatmul.mubr.f32.gmra.mrb[0].mxu0 %v169
  %v171 = vpop.f32.mrb[0].mxu0
  %v172 = vadd.f32 %v48, %v171
  %v173 = vpop.f32.mrb[0].mxu0
  %v174 = vadd.f32 %v48, %v173
  %175 = vdwg.mxu0
  %v176 = vand.u32 %v19, 4294901760
  %v177 = vsub.f32 %v19, %v176
  %v178 = vand.u32 %v177, 4294901760
  %v179 = vsub.f32 %v177, %v178
  %v180 = vand.u32 %v179, 4294901760
  %181 = vmatprep.subr.mxu0 %v180
  %v182 = vand.u32 %v18, 4294901760
  %v183 = vsub.f32 %v18, %v182
  %v184 = vand.u32 %v183, 4294901760
  %v185 = vsub.f32 %v183, %v184
  %v186 = vand.u32 %v185, 4294901760
  %187 = vmatpush1.msra.mxu0 %v186
  %v188 = vand.u32 %v23, 4294901760
  %v189 = vsub.f32 %v23, %v188
  %v190 = vand.u32 %v189, 4294901760
  %v191 = vsub.f32 %v189, %v190
  %v192 = vand.u32 %v191, 4294901760
  %193 = vmatprep.subr.mxu0 %v192
  %v194 = vand.u32 %v22, 4294901760
  %v195 = vsub.f32 %v22, %v194
  %v196 = vand.u32 %v195, 4294901760
  %v197 = vsub.f32 %v195, %v196
  %v198 = vand.u32 %v197, 4294901760
  %199 = vmatpush1.msra.mxu0 %v198
  %200 = vmatprep.subr.mxu0 0.0
  %201 = vmatpush1.msra.mxu0 0.0
  %202 = vmatprep.subr.mxu0 0.0
  %203 = vmatpush1.msra.mxu0 0.0
  %204 = vmatprep.subr.mxu0 0.0
  %205 = vmatpush1.msra.mxu0 0.0
  %206 = vmatprep.subr.mxu0 0.0
  %207 = vmatpush1.msra.mxu0 0.0
  %208 = vmatprep.subr.mxu0 0.0
  %209 = vmatpush1.msra.mxu0 0.0
  %210 = vmatprep.subr.mxu0 0.0
  %211 = vmatpush1.msra.mxu0 0.0
  %212 = vmatprep.subr.mxu0 0.0
  %213 = vmatpush1.msra.mxu0 0.0
  %214 = vmatprep.subr.mxu0 0.0
  %215 = vmatpush1.msra.mxu0 0.0
  %216 = vmatprep.subr.mxu0 0.0
  %217 = vmatpush1.msra.mxu0 0.0
  %218 = vmatprep.subr.mxu0 0.0
  %219 = vmatpush1.msra.mxu0 0.0
  %220 = vmatprep.subr.mxu0 0.0
  %221 = vmatpush1.msra.mxu0 0.0
  %222 = vmatprep.subr.mxu0 0.0
  %223 = vmatpush1.msra.mxu0 0.0
  %224 = vmatprep.subr.mxu0 0.0
  %225 = vmatpush1.msra.mxu0 0.0
  %226 = vmatprep.subr.mxu0 0.0
  %227 = vmatpush1.msra.mxu0 0.0
  %228 = vmatprep.subr.mxu0 0.0
  %229 = vmatpush1.msra.mxu0 0.0
  %230 = vmatprep.subr.mxu0 0.0
  %231 = vmatpush1.msra.mxu0 0.0
  %232 = vmatprep.subr.mxu0 0.0
  %233 = vmatpush1.msra.mxu0 0.0
  %234 = vmatprep.subr.mxu0 0.0
  %235 = vmatpush1.msra.mxu0 0.0
  %236 = vmatprep.subr.mxu0 0.0
  %237 = vmatpush1.msra.mxu0 0.0
  %238 = vmatprep.subr.mxu0 0.0
  %239 = vmatpush1.msra.mxu0 0.0
  %240 = vmatprep.subr.mxu0 0.0
  %241 = vmatpush1.msra.mxu0 0.0
  %242 = vmatprep.subr.mxu0 0.0
  %243 = vmatpush1.msra.mxu0 0.0
  %244 = vmatprep.subr.mxu0 0.0
  %245 = vmatpush1.msra.mxu0 0.0
  %246 = vmatprep.subr.mxu0 0.0
  %247 = vmatpush1.msra.mxu0 0.0
  %248 = vmatprep.subr.mxu0 0.0
  %249 = vmatpush1.msra.mxu0 0.0
  %250 = vmatprep.subr.mxu0 0.0
  %251 = vmatpush1.msra.mxu0 0.0
  %252 = vmatprep.subr.mxu0 0.0
  %253 = vmatpush1.msra.mxu0 0.0
  %254 = vmatprep.subr.mxu0 0.0
  %255 = vmatpush1.msra.mxu0 0.0
  %256 = vmatprep.subr.mxu0 0.0
  %257 = vmatpush1.msra.mxu0 0.0
  %258 = vmatprep.subr.mxu0 0.0
  %259 = vmatpush1.msra.mxu0 0.0
  %260 = vmatprep.mubr.f32.mxu0 0.0
  %v261 = vand.u32 %v52, 4294901760
  %262 = vmatmul.mubr.f32.gmra.mrb[0].mxu0 %v261
  %v263 = vpop.f32.mrb[0].mxu0
  %v264 = vadd.f32 %v139, %v263
  %v265 = vpop.f32.mrb[0].mxu0
  %v266 = vadd.f32 %v141, %v265
  %267 = vmatprep.mubr.f32.mxu0 0.0
  %v268 = vand.u32 %v55, 4294901760
  %269 = vmatmul.mubr.f32.gmra.mrb[0].mxu0 %v268
  %v270 = vpop.f32.mrb[0].mxu0
  %v271 = vadd.f32 %v150, %v270
  %v272 = vpop.f32.mrb[0].mxu0
  %v273 = vadd.f32 %v152, %v272
  %274 = vmatprep.mubr.f32.mxu0 0.0
  %v275 = vand.u32 %v58, 4294901760
  %276 = vmatmul.mubr.f32.gmra.mrb[0].mxu0 %v275
  %v277 = vpop.f32.mrb[0].mxu0
  %v278 = vadd.f32 %v161, %v277
  %v279 = vpop.f32.mrb[0].mxu0
  %v280 = vadd.f32 %v163, %v279
  %281 = vmatprep.mubr.f32.mxu0 0.0
  %v282 = vand.u32 %v61, 4294901760
  %283 = vmatmul.mubr.f32.gmra.mrb[0].mxu0 %v282
  %v284 = vpop.f32.mrb[0].mxu0
  %v285 = vadd.f32 %v172, %v284
  %v286 = vpop.f32.mrb[0].mxu0
  %v287 = vadd.f32 %v174, %v286
  %288 = vdwg.mxu0
  %v289 = vand.u32 %v19, 4294901760
  %v290 = vsub.f32 %v19, %v289
  %291 = vmatprep.subr.mxu0 %v290
  %v292 = vand.u32 %v18, 4294901760
  %v293 = vsub.f32 %v18, %v292
  %294 = vmatpush1.msra.mxu0 %v293
  %v295 = vand.u32 %v23, 4294901760
  %v296 = vsub.f32 %v23, %v295
  %297 = vmatprep.subr.mxu0 %v296
  %v298 = vand.u32 %v22, 4294901760
  %v299 = vsub.f32 %v22, %v298
  %300 = vmatpush1.msra.mxu0 %v299
  %301 = vmatprep.subr.mxu0 0.0
  %302 = vmatpush1.msra.mxu0 0.0
  %303 = vmatprep.subr.mxu0 0.0
  %304 = vmatpush1.msra.mxu0 0.0
  %305 = vmatprep.subr.mxu0 0.0
  %306 = vmatpush1.msra.mxu0 0.0
  %307 = vmatprep.subr.mxu0 0.0
  %308 = vmatpush1.msra.mxu0 0.0
  %309 = vmatprep.subr.mxu0 0.0
  %310 = vmatpush1.msra.mxu0 0.0
  %311 = vmatprep.subr.mxu0 0.0
  %312 = vmatpush1.msra.mxu0 0.0
  %313 = vmatprep.subr.mxu0 0.0
  %314 = vmatpush1.msra.mxu0 0.0
  %315 = vmatprep.subr.mxu0 0.0
  %316 = vmatpush1.msra.mxu0 0.0
  %317 = vmatprep.subr.mxu0 0.0
  %318 = vmatpush1.msra.mxu0 0.0
  %319 = vmatprep.subr.mxu0 0.0
  %320 = vmatpush1.msra.mxu0 0.0
  %321 = vmatprep.subr.mxu0 0.0
  %322 = vmatpush1.msra.mxu0 0.0
  %323 = vmatprep.subr.mxu0 0.0
  %324 = vmatpush1.msra.mxu0 0.0
  %325 = vmatprep.subr.mxu0 0.0
  %326 = vmatpush1.msra.mxu0 0.0
  %327 = vmatprep.subr.mxu0 0.0
  %328 = vmatpush1.msra.mxu0 0.0
  %329 = vmatprep.subr.mxu0 0.0
  %330 = vmatpush1.msra.mxu0 0.0
  %331 = vmatprep.subr.mxu0 0.0
  %332 = vmatpush1.msra.mxu0 0.0
  %333 = vmatprep.subr.mxu0 0.0
  %334 = vmatpush1.msra.mxu0 0.0
  %335 = vmatprep.subr.mxu0 0.0
  %336 = vmatpush1.msra.mxu0 0.0
  %337 = vmatprep.subr.mxu0 0.0
  %338 = vmatpush1.msra.mxu0 0.0
  %339 = vmatprep.subr.mxu0 0.0
  %340 = vmatpush1.msra.mxu0 0.0
  %341 = vmatprep.subr.mxu0 0.0
  %342 = vmatpush1.msra.mxu0 0.0
  %343 = vmatprep.subr.mxu0 0.0
  %344 = vmatpush1.msra.mxu0 0.0
  %345 = vmatprep.subr.mxu0 0.0
  %346 = vmatpush1.msra.mxu0 0.0
  %347 = vmatprep.subr.mxu0 0.0
  %348 = vmatpush1.msra.mxu0 0.0
  %349 = vmatprep.subr.mxu0 0.0
  %350 = vmatpush1.msra.mxu0 0.0
  %351 = vmatprep.subr.mxu0 0.0
  %352 = vmatpush1.msra.mxu0 0.0
  %353 = vmatprep.subr.mxu0 0.0
  %354 = vmatpush1.msra.mxu0 0.0
  %355 = vmatprep.subr.mxu0 0.0
  %356 = vmatpush1.msra.mxu0 0.0
  %357 = vmatprep.subr.mxu0 0.0
  %358 = vmatpush1.msra.mxu0 0.0
  %359 = vmatprep.subr.mxu0 0.0
  %360 = vmatpush1.msra.mxu0 0.0
  %361 = vmatprep.mubr.f32.mxu0 0.0
  %v362 = vand.u32 %v52, 4294901760
  %v363 = vsub.f32 %v52, %v362
  %364 = vmatmul.mubr.f32.gmra.mrb[0].mxu0 %v363
  %v365 = vpop.f32.mrb[0].mxu0
  %v366 = vadd.f32 %v264, %v365
  %v367 = vpop.f32.mrb[0].mxu0
  %v368 = vadd.f32 %v266, %v367
  %369 = vmatprep.mubr.f32.mxu0 0.0
  %v370 = vand.u32 %v55, 4294901760
  %v371 = vsub.f32 %v55, %v370
  %372 = vmatmul.mubr.f32.gmra.mrb[0].mxu0 %v371
  %v373 = vpop.f32.mrb[0].mxu0
  %v374 = vadd.f32 %v271, %v373
  %v375 = vpop.f32.mrb[0].mxu0
  %v376 = vadd.f32 %v273, %v375
  %377 = vmatprep.mubr.f32.mxu0 0.0
  %v378 = vand.u32 %v58, 4294901760
  %v379 = vsub.f32 %v58, %v378
  %380 = vmatmul.mubr.f32.gmra.mrb[0].mxu0 %v379
  %v381 = vpop.f32.mrb[0].mxu0
  %v382 = vadd.f32 %v278, %v381
  %v383 = vpop.f32.mrb[0].mxu0
  %v384 = vadd.f32 %v280, %v383
  %385 = vmatprep.mubr.f32.mxu0 0.0
  %v386 = vand.u32 %v61, 4294901760
  %v387 = vsub.f32 %v61, %v386
  %388 = vmatmul.mubr.f32.gmra.mrb[0].mxu0 %v387
  %v389 = vpop.f32.mrb[0].mxu0
  %v390 = vadd.f32 %v285, %v389
  %v391 = vpop.f32.mrb[0].mxu0
  %v392 = vadd.f32 %v287, %v391
  %393 = vdwg.mxu0
  %v394 = vand.u32 %v19, 4294901760
  %395 = vmatprep.subr.mxu0 %v394
  %v396 = vand.u32 %v18, 4294901760
  %397 = vmatpush1.msra.mxu0 %v396
  %v398 = vand.u32 %v23, 4294901760
  %399 = vmatprep.subr.mxu0 %v398
  %v400 = vand.u32 %v22, 4294901760
  %401 = vmatpush1.msra.mxu0 %v400
  %402 = vmatprep.subr.mxu0 0.0
  %403 = vmatpush1.msra.mxu0 0.0
  %404 = vmatprep.subr.mxu0 0.0
  %405 = vmatpush1.msra.mxu0 0.0
  %406 = vmatprep.subr.mxu0 0.0
  %407 = vmatpush1.msra.mxu0 0.0
  %408 = vmatprep.subr.mxu0 0.0
  %409 = vmatpush1.msra.mxu0 0.0
  %410 = vmatprep.subr.mxu0 0.0
  %411 = vmatpush1.msra.mxu0 0.0
  %412 = vmatprep.subr.mxu0 0.0
  %413 = vmatpush1.msra.mxu0 0.0
  %414 = vmatprep.subr.mxu0 0.0
  %415 = vmatpush1.msra.mxu0 0.0
  %416 = vmatprep.subr.mxu0 0.0
  %417 = vmatpush1.msra.mxu0 0.0
  %418 = vmatprep.subr.mxu0 0.0
  %419 = vmatpush1.msra.mxu0 0.0
  %420 = vmatprep.subr.mxu0 0.0
  %421 = vmatpush1.msra.mxu0 0.0
  %422 = vmatprep.subr.mxu0 0.0
  %423 = vmatpush1.msra.mxu0 0.0
  %424 = vmatprep.subr.mxu0 0.0
  %425 = vmatpush1.msra.mxu0 0.0
  %426 = vmatprep.subr.mxu0 0.0
  %427 = vmatpush1.msra.mxu0 0.0
  %428 = vmatprep.subr.mxu0 0.0
  %429 = vmatpush1.msra.mxu0 0.0
  %430 = vmatprep.subr.mxu0 0.0
  %431 = vmatpush1.msra.mxu0 0.0
  %432 = vmatprep.subr.mxu0 0.0
  %433 = vmatpush1.msra.mxu0 0.0
  %434 = vmatprep.subr.mxu0 0.0
  %435 = vmatpush1.msra.mxu0 0.0
  %436 = vmatprep.subr.mxu0 0.0
  %437 = vmatpush1.msra.mxu0 0.0
  %438 = vmatprep.subr.mxu0 0.0
  %439 = vmatpush1.msra.mxu0 0.0
  %440 = vmatprep.subr.mxu0 0.0
  %441 = vmatpush1.msra.mxu0 0.0
  %442 = vmatprep.subr.mxu0 0.0
  %443 = vmatpush1.msra.mxu0 0.0
  %444 = vmatprep.subr.mxu0 0.0
  %445 = vmatpush1.msra.mxu0 0.0
  %446 = vmatprep.subr.mxu0 0.0
  %447 = vmatpush1.msra.mxu0 0.0
  %448 = vmatprep.subr.mxu0 0.0
  %449 = vmatpush1.msra.mxu0 0.0
  %450 = vmatprep.subr.mxu0 0.0
  %451 = vmatpush1.msra.mxu0 0.0
  %452 = vmatprep.subr.mxu0 0.0
  %453 = vmatpush1.msra.mxu0 0.0
  %454 = vmatprep.subr.mxu0 0.0
  %455 = vmatpush1.msra.mxu0 0.0
  %456 = vmatprep.subr.mxu0 0.0
  %457 = vmatpush1.msra.mxu0 0.0
  %458 = vmatprep.subr.mxu0 0.0
  %459 = vmatpush1.msra.mxu0 0.0
  %460 = vmatprep.subr.mxu0 0.0
  %461 = vmatpush1.msra.mxu0 0.0
  %462 = vmatprep.mubr.f32.mxu0 0.0
  %v463 = vand.u32 %v52, 4294901760
  %v464 = vsub.f32 %v52, %v463
  %v465 = vand.u32 %v464, 4294901760
  %466 = vmatmul.mubr.f32.gmra.mrb[0].mxu0 %v465
  %v467 = vpop.f32.mrb[0].mxu0
  %v468 = vadd.f32 %v366, %v467
  %v469 = vpop.f32.mrb[0].mxu0
  %v470 = vadd.f32 %v368, %v469
  %471 = vmatprep.mubr.f32.mxu0 0.0
  %v472 = vand.u32 %v55, 4294901760
  %v473 = vsub.f32 %v55, %v472
  %v474 = vand.u32 %v473, 4294901760
  %475 = vmatmul.mubr.f32.gmra.mrb[0].mxu0 %v474
  %v476 = vpop.f32.mrb[0].mxu0
  %v477 = vadd.f32 %v374, %v476
  %v478 = vpop.f32.mrb[0].mxu0
  %v479 = vadd.f32 %v376, %v478
  %480 = vmatprep.mubr.f32.mxu0 0.0
  %v481 = vand.u32 %v58, 4294901760
  %v482 = vsub.f32 %v58, %v481
  %v483 = vand.u32 %v482, 4294901760
  %484 = vmatmul.mubr.f32.gmra.mrb[0].mxu0 %v483
  %v485 = vpop.f32.mrb[0].mxu0
  %v486 = vadd.f32 %v382, %v485
  %v487 = vpop.f32.mrb[0].mxu0
  %v488 = vadd.f32 %v384, %v487
  %489 = vmatprep.mubr.f32.mxu0 0.0
  %v490 = vand.u32 %v61, 4294901760
  %v491 = vsub.f32 %v61, %v490
  %v492 = vand.u32 %v491, 4294901760
  %493 = vmatmul.mubr.f32.gmra.mrb[0].mxu0 %v492
  %v494 = vpop.f32.mrb[0].mxu0
  %v495 = vadd.f32 %v390, %v494
  %v496 = vpop.f32.mrb[0].mxu0
  %v497 = vadd.f32 %v392, %v496
  %498 = vdwg.mxu0
  %v499 = vand.u32 %v19, 4294901760
  %v500 = vsub.f32 %v19, %v499
  %v501 = vand.u32 %v500, 4294901760
  %502 = vmatprep.subr.mxu0 %v501
  %v503 = vand.u32 %v18, 4294901760
  %v504 = vsub.f32 %v18, %v503
  %v505 = vand.u32 %v504, 4294901760
  %506 = vmatpush1.msra.mxu0 %v505
  %v507 = vand.u32 %v23, 4294901760
  %v508 = vsub.f32 %v23, %v507
  %v509 = vand.u32 %v508, 4294901760
  %510 = vmatprep.subr.mxu0 %v509
  %v511 = vand.u32 %v22, 4294901760
  %v512 = vsub.f32 %v22, %v511
  %v513 = vand.u32 %v512, 4294901760
  %514 = vmatpush1.msra.mxu0 %v513
  %515 = vmatprep.subr.mxu0 0.0
  %516 = vmatpush1.msra.mxu0 0.0
  %517 = vmatprep.subr.mxu0 0.0
  %518 = vmatpush1.msra.mxu0 0.0
  %519 = vmatprep.subr.mxu0 0.0
  %520 = vmatpush1.msra.mxu0 0.0
  %521 = vmatprep.subr.mxu0 0.0
  %522 = vmatpush1.msra.mxu0 0.0
  %523 = vmatprep.subr.mxu0 0.0
  %524 = vmatpush1.msra.mxu0 0.0
  %525 = vmatprep.subr.mxu0 0.0
  %526 = vmatpush1.msra.mxu0 0.0
  %527 = vmatprep.subr.mxu0 0.0
  %528 = vmatpush1.msra.mxu0 0.0
  %529 = vmatprep.subr.mxu0 0.0
  %530 = vmatpush1.msra.mxu0 0.0
  %531 = vmatprep.subr.mxu0 0.0
  %532 = vmatpush1.msra.mxu0 0.0
  %533 = vmatprep.subr.mxu0 0.0
  %534 = vmatpush1.msra.mxu0 0.0
  %535 = vmatprep.subr.mxu0 0.0
  %536 = vmatpush1.msra.mxu0 0.0
  %537 = vmatprep.subr.mxu0 0.0
  %538 = vmatpush1.msra.mxu0 0.0
  %539 = vmatprep.subr.mxu0 0.0
  %540 = vmatpush1.msra.mxu0 0.0
  %541 = vmatprep.subr.mxu0 0.0
  %542 = vmatpush1.msra.mxu0 0.0
  %543 = vmatprep.subr.mxu0 0.0
  %544 = vmatpush1.msra.mxu0 0.0
  %545 = vmatprep.subr.mxu0 0.0
  %546 = vmatpush1.msra.mxu0 0.0
  %547 = vmatprep.subr.mxu0 0.0
  %548 = vmatpush1.msra.mxu0 0.0
  %549 = vmatprep.subr.mxu0 0.0
  %550 = vmatpush1.msra.mxu0 0.0
  %551 = vmatprep.subr.mxu0 0.0
  %552 = vmatpush1.msra.mxu0 0.0
  %553 = vmatprep.subr.mxu0 0.0
  %554 = vmatpush1.msra.mxu0 0.0
  %555 = vmatprep.subr.mxu0 0.0
  %556 = vmatpush1.msra.mxu0 0.0
  %557 = vmatprep.subr.mxu0 0.0
  %558 = vmatpush1.msra.mxu0 0.0
  %559 = vmatprep.subr.mxu0 0.0
  %560 = vmatpush1.msra.mxu0 0.0
  %561 = vmatprep.subr.mxu0 0.0
  %562 = vmatpush1.msra.mxu0 0.0
  %563 = vmatprep.subr.mxu0 0.0
  %564 = vmatpush1.msra.mxu0 0.0
  %565 = vmatprep.subr.mxu0 0.0
  %566 = vmatpush1.msra.mxu0 0.0
  %567 = vmatprep.subr.mxu0 0.0
  %568 = vmatpush1.msra.mxu0 0.0
  %569 = vmatprep.subr.mxu0 0.0
  %570 = vmatpush1.msra.mxu0 0.0
  %571 = vmatprep.subr.mxu0 0.0
  %572 = vmatpush1.msra.mxu0 0.0
  %573 = vmatprep.subr.mxu0 0.0
  %574 = vmatpush1.msra.mxu0 0.0
  %575 = vmatprep.mubr.f32.mxu0 0.0
  %v576 = vand.u32 %v52, 4294901760
  %577 = vmatmul.mubr.f32.gmra.mrb[0].mxu0 %v576
  %v578 = vpop.f32.mrb[0].mxu0
  %v579 = vadd.f32 %v468, %v578
  %v580 = vpop.f32.mrb[0].mxu0
  %v581 = vadd.f32 %v470, %v580
  %582 = vmatprep.mubr.f32.mxu0 0.0
  %v583 = vand.u32 %v55, 4294901760
  %584 = vmatmul.mubr.f32.gmra.mrb[0].mxu0 %v583
  %v585 = vpop.f32.mrb[0].mxu0
  %v586 = vadd.f32 %v477, %v585
  %v587 = vpop.f32.mrb[0].mxu0
  %v588 = vadd.f32 %v479, %v587
  %589 = vmatprep.mubr.f32.mxu0 0.0
  %v590 = vand.u32 %v58, 4294901760
  %591 = vmatmul.mubr.f32.gmra.mrb[0].mxu0 %v590
  %v592 = vpop.f32.mrb[0].mxu0
  %v593 = vadd.f32 %v486, %v592
  %v594 = vpop.f32.mrb[0].mxu0
  %v595 = vadd.f32 %v488, %v594
  %596 = vmatprep.mubr.f32.mxu0 0.0
  %v597 = vand.u32 %v61, 4294901760
  %598 = vmatmul.mubr.f32.gmra.mrb[0].mxu0 %v597
  %v599 = vpop.f32.mrb[0].mxu0
  %v600 = vadd.f32 %v495, %v599
  %v601 = vpop.f32.mrb[0].mxu0
  %v602 = vadd.f32 %v497, %v601
  %603 = vdwg.mxu0
  %v604 = vand.u32 %v19, 4294901760
  %605 = vmatprep.subr.mxu0 %v604
  %v606 = vand.u32 %v18, 4294901760
  %607 = vmatpush1.msra.mxu0 %v606
  %v608 = vand.u32 %v23, 4294901760
  %609 = vmatprep.subr.mxu0 %v608
  %v610 = vand.u32 %v22, 4294901760
  %611 = vmatpush1.msra.mxu0 %v610
  %612 = vmatprep.subr.mxu0 0.0
  %613 = vmatpush1.msra.mxu0 0.0
  %614 = vmatprep.subr.mxu0 0.0
  %615 = vmatpush1.msra.mxu0 0.0
  %616 = vmatprep.subr.mxu0 0.0
  %617 = vmatpush1.msra.mxu0 0.0
  %618 = vmatprep.subr.mxu0 0.0
  %619 = vmatpush1.msra.mxu0 0.0
  %620 = vmatprep.subr.mxu0 0.0
  %621 = vmatpush1.msra.mxu0 0.0
  %622 = vmatprep.subr.mxu0 0.0
  %623 = vmatpush1.msra.mxu0 0.0
  %624 = vmatprep.subr.mxu0 0.0
  %625 = vmatpush1.msra.mxu0 0.0
  %626 = vmatprep.subr.mxu0 0.0
  %627 = vmatpush1.msra.mxu0 0.0
  %628 = vmatprep.subr.mxu0 0.0
  %629 = vmatpush1.msra.mxu0 0.0
  %630 = vmatprep.subr.mxu0 0.0
  %631 = vmatpush1.msra.mxu0 0.0
  %632 = vmatprep.subr.mxu0 0.0
  %633 = vmatpush1.msra.mxu0 0.0
  %634 = vmatprep.subr.mxu0 0.0
  %635 = vmatpush1.msra.mxu0 0.0
  %636 = vmatprep.subr.mxu0 0.0
  %637 = vmatpush1.msra.mxu0 0.0
  %638 = vmatprep.subr.mxu0 0.0
  %639 = vmatpush1.msra.mxu0 0.0
  %640 = vmatprep.subr.mxu0 0.0
  %641 = vmatpush1.msra.mxu0 0.0
  %642 = vmatprep.subr.mxu0 0.0
  %643 = vmatpush1.msra.mxu0 0.0
  %644 = vmatprep.subr.mxu0 0.0
  %645 = vmatpush1.msra.mxu0 0.0
  %646 = vmatprep.subr.mxu0 0.0
  %647 = vmatpush1.msra.mxu0 0.0
  %648 = vmatprep.subr.mxu0 0.0
  %649 = vmatpush1.msra.mxu0 0.0
  %650 = vmatprep.subr.mxu0 0.0
  %651 = vmatpush1.msra.mxu0 0.0
  %652 = vmatprep.subr.mxu0 0.0
  %653 = vmatpush1.msra.mxu0 0.0
  %654 = vmatprep.subr.mxu0 0.0
  %655 = vmatpush1.msra.mxu0 0.0
  %656 = vmatprep.subr.mxu0 0.0
  %657 = vmatpush1.msra.mxu0 0.0
  %658 = vmatprep.subr.mxu0 0.0
  %659 = vmatpush1.msra.mxu0 0.0
  %660 = vmatprep.subr.mxu0 0.0
  %661 = vmatpush1.msra.mxu0 0.0
  %662 = vmatprep.subr.mxu0 0.0
  %663 = vmatpush1.msra.mxu0 0.0
  %664 = vmatprep.subr.mxu0 0.0
  %665 = vmatpush1.msra.mxu0 0.0
  %666 = vmatprep.subr.mxu0 0.0
  %667 = vmatpush1.msra.mxu0 0.0
  %668 = vmatprep.subr.mxu0 0.0
  %669 = vmatpush1.msra.mxu0 0.0
  %670 = vmatprep.subr.mxu0 0.0
  %671 = vmatpush1.msra.mxu0 0.0
  %672 = vmatprep.mubr.f32.mxu0 0.0
  %v673 = vand.u32 %v52, 4294901760
  %674 = vmatmul.mubr.f32.gmra.mrb[0].mxu0 %v673
  %v675 = vpop.f32.mrb[0].mxu0
  %v676 = vadd.f32 %v579, %v675
  %v677 = vpop.f32.mrb[0].mxu0
  %v678 = vadd.f32 %v581, %v677
  %679 = vmatprep.mubr.f32.mxu0 0.0
  %v680 = vand.u32 %v55, 4294901760
  %681 = vmatmul.mubr.f32.gmra.mrb[0].mxu0 %v680
  %v682 = vpop.f32.mrb[0].mxu0
  %v683 = vadd.f32 %v586, %v682
  %v684 = vpop.f32.mrb[0].mxu0
  %v685 = vadd.f32 %v588, %v684
  %686 = vmatprep.mubr.f32.mxu0 0.0
  %v687 = vand.u32 %v58, 4294901760
  %688 = vmatmul.mubr.f32.gmra.mrb[0].mxu0 %v687
  %v689 = vpop.f32.mrb[0].mxu0
  %v690 = vadd.f32 %v593, %v689
  %v691 = vpop.f32.mrb[0].mxu0
  %v692 = vadd.f32 %v595, %v691
  %693 = vmatprep.mubr.f32.mxu0 0.0
  %v694 = vand.u32 %v61, 4294901760
  %695 = vmatmul.mubr.f32.gmra.mrb[0].mxu0 %v694
  %v696 = vpop.f32.mrb[0].mxu0
  %v697 = vadd.f32 %v600, %v696
  %v698 = vpop.f32.mrb[0].mxu0
  %v699 = vadd.f32 %v602, %v698
  %700 = vdwg.mxu0
  %v701 = vand.u32 %v21, 4294901760
  %702 = vmatprep.subr.mxu0 %v701
  %v703 = vand.u32 %v20, 4294901760
  %704 = vmatpush1.msra.mxu0 %v703
  %v705 = vand.u32 %v25, 4294901760
  %706 = vmatprep.subr.mxu0 %v705
  %v707 = vand.u32 %v24, 4294901760
  %708 = vmatpush1.msra.mxu0 %v707
  %709 = vmatprep.subr.mxu0 0.0
  %710 = vmatpush1.msra.mxu0 0.0
  %711 = vmatprep.subr.mxu0 0.0
  %712 = vmatpush1.msra.mxu0 0.0
  %713 = vmatprep.subr.mxu0 0.0
  %714 = vmatpush1.msra.mxu0 0.0
  %715 = vmatprep.subr.mxu0 0.0
  %716 = vmatpush1.msra.mxu0 0.0
  %717 = vmatprep.subr.mxu0 0.0
  %718 = vmatpush1.msra.mxu0 0.0
  %719 = vmatprep.subr.mxu0 0.0
  %720 = vmatpush1.msra.mxu0 0.0
  %721 = vmatprep.subr.mxu0 0.0
  %722 = vmatpush1.msra.mxu0 0.0
  %723 = vmatprep.subr.mxu0 0.0
  %724 = vmatpush1.msra.mxu0 0.0
  %725 = vmatprep.subr.mxu0 0.0
  %726 = vmatpush1.msra.mxu0 0.0
  %727 = vmatprep.subr.mxu0 0.0
  %728 = vmatpush1.msra.mxu0 0.0
  %729 = vmatprep.subr.mxu0 0.0
  %730 = vmatpush1.msra.mxu0 0.0
  %731 = vmatprep.subr.mxu0 0.0
  %732 = vmatpush1.msra.mxu0 0.0
  %733 = vmatprep.subr.mxu0 0.0
  %734 = vmatpush1.msra.mxu0 0.0
  %735 = vmatprep.subr.mxu0 0.0
  %736 = vmatpush1.msra.mxu0 0.0
  %737 = vmatprep.subr.mxu0 0.0
  %738 = vmatpush1.msra.mxu0 0.0
  %739 = vmatprep.subr.mxu0 0.0
  %740 = vmatpush1.msra.mxu0 0.0
  %741 = vmatprep.subr.mxu0 0.0
  %742 = vmatpush1.msra.mxu0 0.0
  %743 = vmatprep.subr.mxu0 0.0
  %744 = vmatpush1.msra.mxu0 0.0
  %745 = vmatprep.subr.mxu0 0.0
  %746 = vmatpush1.msra.mxu0 0.0
  %747 = vmatprep.subr.mxu0 0.0
  %748 = vmatpush1.msra.mxu0 0.0
  %749 = vmatprep.subr.mxu0 0.0
  %750 = vmatpush1.msra.mxu0 0.0
  %751 = vmatprep.subr.mxu0 0.0
  %752 = vmatpush1.msra.mxu0 0.0
  %753 = vmatprep.subr.mxu0 0.0
  %754 = vmatpush1.msra.mxu0 0.0
  %755 = vmatprep.subr.mxu0 0.0
  %756 = vmatpush1.msra.mxu0 0.0
  %757 = vmatprep.subr.mxu0 0.0
  %758 = vmatpush1.msra.mxu0 0.0
  %759 = vmatprep.subr.mxu0 0.0
  %760 = vmatpush1.msra.mxu0 0.0
  %761 = vmatprep.subr.mxu0 0.0
  %762 = vmatpush1.msra.mxu0 0.0
  %763 = vmatprep.subr.mxu0 0.0
  %764 = vmatpush1.msra.mxu0 0.0
  %765 = vmatprep.subr.mxu0 0.0
  %766 = vmatpush1.msra.mxu0 0.0
  %767 = vmatprep.subr.mxu0 0.0
  %768 = vmatpush1.msra.mxu0 0.0
  %769 = vmatprep.mubr.f32.mxu0 0.0
  %v770 = vand.u32 %v52, 4294901760
  %v771 = vsub.f32 %v52, %v770
  %v772 = vand.u32 %v771, 4294901760
  %v773 = vsub.f32 %v771, %v772
  %v774 = vand.u32 %v773, 4294901760
  %775 = vmatmul.mubr.f32.gmra.mrb[0].mxu0 %v774
  %v776 = vpop.f32.mrb[0].mxu0
  %v777 = vadd.f32 %v33, %v776
  %v778 = vpop.f32.mrb[0].mxu0
  %v779 = vadd.f32 %v33, %v778
  %780 = vmatprep.mubr.f32.mxu0 0.0
  %v781 = vand.u32 %v55, 4294901760
  %v782 = vsub.f32 %v55, %v781
  %v783 = vand.u32 %v782, 4294901760
  %v784 = vsub.f32 %v782, %v783
  %v785 = vand.u32 %v784, 4294901760
  %786 = vmatmul.mubr.f32.gmra.mrb[0].mxu0 %v785
  %v787 = vpop.f32.mrb[0].mxu0
  %v788 = vadd.f32 %v38, %v787
  %v789 = vpop.f32.mrb[0].mxu0
  %v790 = vadd.f32 %v38, %v789
  %791 = vmatprep.mubr.f32.mxu0 0.0
  %v792 = vand.u32 %v58, 4294901760
  %v793 = vsub.f32 %v58, %v792
  %v794 = vand.u32 %v793, 4294901760
  %v795 = vsub.f32 %v793, %v794
  %v796 = vand.u32 %v795, 4294901760
  %797 = vmatmul.mubr.f32.gmra.mrb[0].mxu0 %v796
  %v798 = vpop.f32.mrb[0].mxu0
  %v799 = vadd.f32 %v43, %v798
  %v800 = vpop.f32.mrb[0].mxu0
  %v801 = vadd.f32 %v43, %v800
  %802 = vmatprep.mubr.f32.mxu0 0.0
  %v803 = vand.u32 %v61, 4294901760
  %v804 = vsub.f32 %v61, %v803
  %v805 = vand.u32 %v804, 4294901760
  %v806 = vsub.f32 %v804, %v805
  %v807 = vand.u32 %v806, 4294901760
  %808 = vmatmul.mubr.f32.gmra.mrb[0].mxu0 %v807
  %v809 = vpop.f32.mrb[0].mxu0
  %v810 = vadd.f32 %v48, %v809
  %v811 = vpop.f32.mrb[0].mxu0
  %v812 = vadd.f32 %v48, %v811
  %813 = vdwg.mxu0
  %v814 = vand.u32 %v21, 4294901760
  %v815 = vsub.f32 %v21, %v814
  %v816 = vand.u32 %v815, 4294901760
  %v817 = vsub.f32 %v815, %v816
  %v818 = vand.u32 %v817, 4294901760
  %819 = vmatprep.subr.mxu0 %v818
  %v820 = vand.u32 %v20, 4294901760
  %v821 = vsub.f32 %v20, %v820
  %v822 = vand.u32 %v821, 4294901760
  %v823 = vsub.f32 %v821, %v822
  %v824 = vand.u32 %v823, 4294901760
  %825 = vmatpush1.msra.mxu0 %v824
  %v826 = vand.u32 %v25, 4294901760
  %v827 = vsub.f32 %v25, %v826
  %v828 = vand.u32 %v827, 4294901760
  %v829 = vsub.f32 %v827, %v828
  %v830 = vand.u32 %v829, 4294901760
  %831 = vmatprep.subr.mxu0 %v830
  %v832 = vand.u32 %v24, 4294901760
  %v833 = vsub.f32 %v24, %v832
  %v834 = vand.u32 %v833, 4294901760
  %v835 = vsub.f32 %v833, %v834
  %v836 = vand.u32 %v835, 4294901760
  %837 = vmatpush1.msra.mxu0 %v836
  %838 = vmatprep.subr.mxu0 0.0
  %839 = vmatpush1.msra.mxu0 0.0
  %840 = vmatprep.subr.mxu0 0.0
  %841 = vmatpush1.msra.mxu0 0.0
  %842 = vmatprep.subr.mxu0 0.0
  %843 = vmatpush1.msra.mxu0 0.0
  %844 = vmatprep.subr.mxu0 0.0
  %845 = vmatpush1.msra.mxu0 0.0
  %846 = vmatprep.subr.mxu0 0.0
  %847 = vmatpush1.msra.mxu0 0.0
  %848 = vmatprep.subr.mxu0 0.0
  %849 = vmatpush1.msra.mxu0 0.0
  %850 = vmatprep.subr.mxu0 0.0
  %851 = vmatpush1.msra.mxu0 0.0
  %852 = vmatprep.subr.mxu0 0.0
  %853 = vmatpush1.msra.mxu0 0.0
  %854 = vmatprep.subr.mxu0 0.0
  %855 = vmatpush1.msra.mxu0 0.0
  %856 = vmatprep.subr.mxu0 0.0
  %857 = vmatpush1.msra.mxu0 0.0
  %858 = vmatprep.subr.mxu0 0.0
  %859 = vmatpush1.msra.mxu0 0.0
  %860 = vmatprep.subr.mxu0 0.0
  %861 = vmatpush1.msra.mxu0 0.0
  %862 = vmatprep.subr.mxu0 0.0
  %863 = vmatpush1.msra.mxu0 0.0
  %864 = vmatprep.subr.mxu0 0.0
  %865 = vmatpush1.msra.mxu0 0.0
  %866 = vmatprep.subr.mxu0 0.0
  %867 = vmatpush1.msra.mxu0 0.0
  %868 = vmatprep.subr.mxu0 0.0
  %869 = vmatpush1.msra.mxu0 0.0
  %870 = vmatprep.subr.mxu0 0.0
  %871 = vmatpush1.msra.mxu0 0.0
  %872 = vmatprep.subr.mxu0 0.0
  %873 = vmatpush1.msra.mxu0 0.0
  %874 = vmatprep.subr.mxu0 0.0
  %875 = vmatpush1.msra.mxu0 0.0
  %876 = vmatprep.subr.mxu0 0.0
  %877 = vmatpush1.msra.mxu0 0.0
  %878 = vmatprep.subr.mxu0 0.0
  %879 = vmatpush1.msra.mxu0 0.0
  %880 = vmatprep.subr.mxu0 0.0
  %881 = vmatpush1.msra.mxu0 0.0
  %882 = vmatprep.subr.mxu0 0.0
  %883 = vmatpush1.msra.mxu0 0.0
  %884 = vmatprep.subr.mxu0 0.0
  %885 = vmatpush1.msra.mxu0 0.0
  %886 = vmatprep.subr.mxu0 0.0
  %887 = vmatpush1.msra.mxu0 0.0
  %888 = vmatprep.subr.mxu0 0.0
  %889 = vmatpush1.msra.mxu0 0.0
  %890 = vmatprep.subr.mxu0 0.0
  %891 = vmatpush1.msra.mxu0 0.0
  %892 = vmatprep.subr.mxu0 0.0
  %893 = vmatpush1.msra.mxu0 0.0
  %894 = vmatprep.subr.mxu0 0.0
  %895 = vmatpush1.msra.mxu0 0.0
  %896 = vmatprep.subr.mxu0 0.0
  %897 = vmatpush1.msra.mxu0 0.0
  %898 = vmatprep.mubr.f32.mxu0 0.0
  %v899 = vand.u32 %v52, 4294901760
  %900 = vmatmul.mubr.f32.gmra.mrb[0].mxu0 %v899
  %v901 = vpop.f32.mrb[0].mxu0
  %v902 = vadd.f32 %v777, %v901
  %v903 = vpop.f32.mrb[0].mxu0
  %v904 = vadd.f32 %v779, %v903
  %905 = vmatprep.mubr.f32.mxu0 0.0
  %v906 = vand.u32 %v55, 4294901760
  %907 = vmatmul.mubr.f32.gmra.mrb[0].mxu0 %v906
  %v908 = vpop.f32.mrb[0].mxu0
  %v909 = vadd.f32 %v788, %v908
  %v910 = vpop.f32.mrb[0].mxu0
  %v911 = vadd.f32 %v790, %v910
  %912 = vmatprep.mubr.f32.mxu0 0.0
  %v913 = vand.u32 %v58, 4294901760
  %914 = vmatmul.mubr.f32.gmra.mrb[0].mxu0 %v913
  %v915 = vpop.f32.mrb[0].mxu0
  %v916 = vadd.f32 %v799, %v915
  %v917 = vpop.f32.mrb[0].mxu0
  %v918 = vadd.f32 %v801, %v917
  %919 = vmatprep.mubr.f32.mxu0 0.0
  %v920 = vand.u32 %v61, 4294901760
  %921 = vmatmul.mubr.f32.gmra.mrb[0].mxu0 %v920
  %v922 = vpop.f32.mrb[0].mxu0
  %v923 = vadd.f32 %v810, %v922
  %v924 = vpop.f32.mrb[0].mxu0
  %v925 = vadd.f32 %v812, %v924
  %926 = vdwg.mxu0
  %v927 = vand.u32 %v21, 4294901760
  %v928 = vsub.f32 %v21, %v927
  %929 = vmatprep.subr.mxu0 %v928
  %v930 = vand.u32 %v20, 4294901760
  %v931 = vsub.f32 %v20, %v930
  %932 = vmatpush1.msra.mxu0 %v931
  %v933 = vand.u32 %v25, 4294901760
  %v934 = vsub.f32 %v25, %v933
  %935 = vmatprep.subr.mxu0 %v934
  %v936 = vand.u32 %v24, 4294901760
  %v937 = vsub.f32 %v24, %v936
  %938 = vmatpush1.msra.mxu0 %v937
  %939 = vmatprep.subr.mxu0 0.0
  %940 = vmatpush1.msra.mxu0 0.0
  %941 = vmatprep.subr.mxu0 0.0
  %942 = vmatpush1.msra.mxu0 0.0
  %943 = vmatprep.subr.mxu0 0.0
  %944 = vmatpush1.msra.mxu0 0.0
  %945 = vmatprep.subr.mxu0 0.0
  %946 = vmatpush1.msra.mxu0 0.0
  %947 = vmatprep.subr.mxu0 0.0
  %948 = vmatpush1.msra.mxu0 0.0
  %949 = vmatprep.subr.mxu0 0.0
  %950 = vmatpush1.msra.mxu0 0.0
  %951 = vmatprep.subr.mxu0 0.0
  %952 = vmatpush1.msra.mxu0 0.0
  %953 = vmatprep.subr.mxu0 0.0
  %954 = vmatpush1.msra.mxu0 0.0
  %955 = vmatprep.subr.mxu0 0.0
  %956 = vmatpush1.msra.mxu0 0.0
  %957 = vmatprep.subr.mxu0 0.0
  %958 = vmatpush1.msra.mxu0 0.0
  %959 = vmatprep.subr.mxu0 0.0
  %960 = vmatpush1.msra.mxu0 0.0
  %961 = vmatprep.subr.mxu0 0.0
  %962 = vmatpush1.msra.mxu0 0.0
  %963 = vmatprep.subr.mxu0 0.0
  %964 = vmatpush1.msra.mxu0 0.0
  %965 = vmatprep.subr.mxu0 0.0
  %966 = vmatpush1.msra.mxu0 0.0
  %967 = vmatprep.subr.mxu0 0.0
  %968 = vmatpush1.msra.mxu0 0.0
  %969 = vmatprep.subr.mxu0 0.0
  %970 = vmatpush1.msra.mxu0 0.0
  %971 = vmatprep.subr.mxu0 0.0
  %972 = vmatpush1.msra.mxu0 0.0
  %973 = vmatprep.subr.mxu0 0.0
  %974 = vmatpush1.msra.mxu0 0.0
  %975 = vmatprep.subr.mxu0 0.0
  %976 = vmatpush1.msra.mxu0 0.0
  %977 = vmatprep.subr.mxu0 0.0
  %978 = vmatpush1.msra.mxu0 0.0
  %979 = vmatprep.subr.mxu0 0.0
  %980 = vmatpush1.msra.mxu0 0.0
  %981 = vmatprep.subr.mxu0 0.0
  %982 = vmatpush1.msra.mxu0 0.0
  %983 = vmatprep.subr.mxu0 0.0
  %984 = vmatpush1.msra.mxu0 0.0
  %985 = vmatprep.subr.mxu0 0.0
  %986 = vmatpush1.msra.mxu0 0.0
  %987 = vmatprep.subr.mxu0 0.0
  %988 = vmatpush1.msra.mxu0 0.0
  %989 = vmatprep.subr.mxu0 0.0
  %990 = vmatpush1.msra.mxu0 0.0
  %991 = vmatprep.subr.mxu0 0.0
  %992 = vmatpush1.msra.mxu0 0.0
  %993 = vmatprep.subr.mxu0 0.0
  %994 = vmatpush1.msra.mxu0 0.0
  %995 = vmatprep.subr.mxu0 0.0
  %996 = vmatpush1.msra.mxu0 0.0
  %997 = vmatprep.subr.mxu0 0.0
  %998 = vmatpush1.msra.mxu0 0.0
  %999 = vmatprep.mubr.f32.mxu0 0.0
  %v1000 = vand.u32 %v52, 4294901760
  %v1001 = vsub.f32 %v52, %v1000
  %1002 = vmatmul.mubr.f32.gmra.mrb[0].mxu0 %v1001
  %v1003 = vpop.f32.mrb[0].mxu0
  %v1004 = vadd.f32 %v902, %v1003
  %v1005 = vpop.f32.mrb[0].mxu0
  %v1006 = vadd.f32 %v904, %v1005
  %1007 = vmatprep.mubr.f32.mxu0 0.0
  %v1008 = vand.u32 %v55, 4294901760
  %v1009 = vsub.f32 %v55, %v1008
  %1010 = vmatmul.mubr.f32.gmra.mrb[0].mxu0 %v1009
  %v1011 = vpop.f32.mrb[0].mxu0
  %v1012 = vadd.f32 %v909, %v1011
  %v1013 = vpop.f32.mrb[0].mxu0
  %v1014 = vadd.f32 %v911, %v1013
  %1015 = vmatprep.mubr.f32.mxu0 0.0
  %v1016 = vand.u32 %v58, 4294901760
  %v1017 = vsub.f32 %v58, %v1016
  %1018 = vmatmul.mubr.f32.gmra.mrb[0].mxu0 %v1017
  %v1019 = vpop.f32.mrb[0].mxu0
  %v1020 = vadd.f32 %v916, %v1019
  %v1021 = vpop.f32.mrb[0].mxu0
  %v1022 = vadd.f32 %v918, %v1021
  %1023 = vmatprep.mubr.f32.mxu0 0.0
  %v1024 = vand.u32 %v61, 4294901760
  %v1025 = vsub.f32 %v61, %v1024
  %1026 = vmatmul.mubr.f32.gmra.mrb[0].mxu0 %v1025
  %v1027 = vpop.f32.mrb[0].mxu0
  %v1028 = vadd.f32 %v923, %v1027
  %v1029 = vpop.f32.mrb[0].mxu0
  %v1030 = vadd.f32 %v925, %v1029
  %1031 = vdwg.mxu0
  %v1032 = vand.u32 %v21, 4294901760
  %1033 = vmatprep.subr.mxu0 %v1032
  %v1034 = vand.u32 %v20, 4294901760
  %1035 = vmatpush1.msra.mxu0 %v1034
  %v1036 = vand.u32 %v25, 4294901760
  %1037 = vmatprep.subr.mxu0 %v1036
  %v1038 = vand.u32 %v24, 4294901760
  %1039 = vmatpush1.msra.mxu0 %v1038
  %1040 = vmatprep.subr.mxu0 0.0
  %1041 = vmatpush1.msra.mxu0 0.0
  %1042 = vmatprep.subr.mxu0 0.0
  %1043 = vmatpush1.msra.mxu0 0.0
  %1044 = vmatprep.subr.mxu0 0.0
  %1045 = vmatpush1.msra.mxu0 0.0
  %1046 = vmatprep.subr.mxu0 0.0
  %1047 = vmatpush1.msra.mxu0 0.0
  %1048 = vmatprep.subr.mxu0 0.0
  %1049 = vmatpush1.msra.mxu0 0.0
  %1050 = vmatprep.subr.mxu0 0.0
  %1051 = vmatpush1.msra.mxu0 0.0
  %1052 = vmatprep.subr.mxu0 0.0
  %1053 = vmatpush1.msra.mxu0 0.0
  %1054 = vmatprep.subr.mxu0 0.0
  %1055 = vmatpush1.msra.mxu0 0.0
  %1056 = vmatprep.subr.mxu0 0.0
  %1057 = vmatpush1.msra.mxu0 0.0
  %1058 = vmatprep.subr.mxu0 0.0
  %1059 = vmatpush1.msra.mxu0 0.0
  %1060 = vmatprep.subr.mxu0 0.0
  %1061 = vmatpush1.msra.mxu0 0.0
  %1062 = vmatprep.subr.mxu0 0.0
  %1063 = vmatpush1.msra.mxu0 0.0
  %1064 = vmatprep.subr.mxu0 0.0
  %1065 = vmatpush1.msra.mxu0 0.0
  %1066 = vmatprep.subr.mxu0 0.0
  %1067 = vmatpush1.msra.mxu0 0.0
  %1068 = vmatprep.subr.mxu0 0.0
  %1069 = vmatpush1.msra.mxu0 0.0
  %1070 = vmatprep.subr.mxu0 0.0
  %1071 = vmatpush1.msra.mxu0 0.0
  %1072 = vmatprep.subr.mxu0 0.0
  %1073 = vmatpush1.msra.mxu0 0.0
  %1074 = vmatprep.subr.mxu0 0.0
  %1075 = vmatpush1.msra.mxu0 0.0
  %1076 = vmatprep.subr.mxu0 0.0
  %1077 = vmatpush1.msra.mxu0 0.0
  %1078 = vmatprep.subr.mxu0 0.0
  %1079 = vmatpush1.msra.mxu0 0.0
  %1080 = vmatprep.subr.mxu0 0.0
  %1081 = vmatpush1.msra.mxu0 0.0
  %1082 = vmatprep.subr.mxu0 0.0
  %1083 = vmatpush1.msra.mxu0 0.0
  %1084 = vmatprep.subr.mxu0 0.0
  %1085 = vmatpush1.msra.mxu0 0.0
  %1086 = vmatprep.subr.mxu0 0.0
  %1087 = vmatpush1.msra.mxu0 0.0
  %1088 = vmatprep.subr.mxu0 0.0
  %1089 = vmatpush1.msra.mxu0 0.0
  %1090 = vmatprep.subr.mxu0 0.0
  %1091 = vmatpush1.msra.mxu0 0.0
  %1092 = vmatprep.subr.mxu0 0.0
  %1093 = vmatpush1.msra.mxu0 0.0
  %1094 = vmatprep.subr.mxu0 0.0
  %1095 = vmatpush1.msra.mxu0 0.0
  %1096 = vmatprep.subr.mxu0 0.0
  %1097 = vmatpush1.msra.mxu0 0.0
  %1098 = vmatprep.subr.mxu0 0.0
  %1099 = vmatpush1.msra.mxu0 0.0
  %1100 = vmatprep.mubr.f32.mxu0 0.0
  %v1101 = vand.u32 %v52, 4294901760
  %v1102 = vsub.f32 %v52, %v1101
  %v1103 = vand.u32 %v1102, 4294901760
  %1104 = vmatmul.mubr.f32.gmra.mrb[0].mxu0 %v1103
  %v1105 = vpop.f32.mrb[0].mxu0
  %v1106 = vadd.f32 %v1004, %v1105
  %v1107 = vpop.f32.mrb[0].mxu0
  %v1108 = vadd.f32 %v1006, %v1107
  %1109 = vmatprep.mubr.f32.mxu0 0.0
  %v1110 = vand.u32 %v55, 4294901760
  %v1111 = vsub.f32 %v55, %v1110
  %v1112 = vand.u32 %v1111, 4294901760
  %1113 = vmatmul.mubr.f32.gmra.mrb[0].mxu0 %v1112
  %v1114 = vpop.f32.mrb[0].mxu0
  %v1115 = vadd.f32 %v1012, %v1114
  %v1116 = vpop.f32.mrb[0].mxu0
  %v1117 = vadd.f32 %v1014, %v1116
  %1118 = vmatprep.mubr.f32.mxu0 0.0
  %v1119 = vand.u32 %v58, 4294901760
  %v1120 = vsub.f32 %v58, %v1119
  %v1121 = vand.u32 %v1120, 4294901760
  %1122 = vmatmul.mubr.f32.gmra.mrb[0].mxu0 %v1121
  %v1123 = vpop.f32.mrb[0].mxu0
  %v1124 = vadd.f32 %v1020, %v1123
  %v1125 = vpop.f32.mrb[0].mxu0
  %v1126 = vadd.f32 %v1022, %v1125
  %1127 = vmatprep.mubr.f32.mxu0 0.0
  %v1128 = vand.u32 %v61, 4294901760
  %v1129 = vsub.f32 %v61, %v1128
  %v1130 = vand.u32 %v1129, 4294901760
  %1131 = vmatmul.mubr.f32.gmra.mrb[0].mxu0 %v1130
  %v1132 = vpop.f32.mrb[0].mxu0
  %v1133 = vadd.f32 %v1028, %v1132
  %v1134 = vpop.f32.mrb[0].mxu0
  %v1135 = vadd.f32 %v1030, %v1134
  %1136 = vdwg.mxu0
  %v1137 = vand.u32 %v21, 4294901760
  %v1138 = vsub.f32 %v21, %v1137
  %v1139 = vand.u32 %v1138, 4294901760
  %1140 = vmatprep.subr.mxu0 %v1139
  %v1141 = vand.u32 %v20, 4294901760
  %v1142 = vsub.f32 %v20, %v1141
  %v1143 = vand.u32 %v1142, 4294901760
  %1144 = vmatpush1.msra.mxu0 %v1143
  %v1145 = vand.u32 %v25, 4294901760
  %v1146 = vsub.f32 %v25, %v1145
  %v1147 = vand.u32 %v1146, 4294901760
  %1148 = vmatprep.subr.mxu0 %v1147
  %v1149 = vand.u32 %v24, 4294901760
  %v1150 = vsub.f32 %v24, %v1149
  %v1151 = vand.u32 %v1150, 4294901760
  %1152 = vmatpush1.msra.mxu0 %v1151
  %1153 = vmatprep.subr.mxu0 0.0
  %1154 = vmatpush1.msra.mxu0 0.0
  %1155 = vmatprep.subr.mxu0 0.0
  %1156 = vmatpush1.msra.mxu0 0.0
  %1157 = vmatprep.subr.mxu0 0.0
  %1158 = vmatpush1.msra.mxu0 0.0
  %1159 = vmatprep.subr.mxu0 0.0
  %1160 = vmatpush1.msra.mxu0 0.0
  %1161 = vmatprep.subr.mxu0 0.0
  %1162 = vmatpush1.msra.mxu0 0.0
  %1163 = vmatprep.subr.mxu0 0.0
  %1164 = vmatpush1.msra.mxu0 0.0
  %1165 = vmatprep.subr.mxu0 0.0
  %1166 = vmatpush1.msra.mxu0 0.0
  %1167 = vmatprep.subr.mxu0 0.0
  %1168 = vmatpush1.msra.mxu0 0.0
  %1169 = vmatprep.subr.mxu0 0.0
  %1170 = vmatpush1.msra.mxu0 0.0
  %1171 = vmatprep.subr.mxu0 0.0
  %1172 = vmatpush1.msra.mxu0 0.0
  %1173 = vmatprep.subr.mxu0 0.0
  %1174 = vmatpush1.msra.mxu0 0.0
  %1175 = vmatprep.subr.mxu0 0.0
  %1176 = vmatpush1.msra.mxu0 0.0
  %1177 = vmatprep.subr.mxu0 0.0
  %1178 = vmatpush1.msra.mxu0 0.0
  %1179 = vmatprep.subr.mxu0 0.0
  %1180 = vmatpush1.msra.mxu0 0.0
  %1181 = vmatprep.subr.mxu0 0.0
  %1182 = vmatpush1.msra.mxu0 0.0
  %1183 = vmatprep.subr.mxu0 0.0
  %1184 = vmatpush1.msra.mxu0 0.0
  %1185 = vmatprep.subr.mxu0 0.0
  %1186 = vmatpush1.msra.mxu0 0.0
  %1187 = vmatprep.subr.mxu0 0.0
  %1188 = vmatpush1.msra.mxu0 0.0
  %1189 = vmatprep.subr.mxu0 0.0
  %1190 = vmatpush1.msra.mxu0 0.0
  %1191 = vmatprep.subr.mxu0 0.0
  %1192 = vmatpush1.msra.mxu0 0.0
  %1193 = vmatprep.subr.mxu0 0.0
  %1194 = vmatpush1.msra.mxu0 0.0
  %1195 = vmatprep.subr.mxu0 0.0
  %1196 = vmatpush1.msra.mxu0 0.0
  %1197 = vmatprep.subr.mxu0 0.0
  %1198 = vmatpush1.msra.mxu0 0.0
  %1199 = vmatprep.subr.mxu0 0.0
  %1200 = vmatpush1.msra.mxu0 0.0
  %1201 = vmatprep.subr.mxu0 0.0
  %1202 = vmatpush1.msra.mxu0 0.0
  %1203 = vmatprep.subr.mxu0 0.0
  %1204 = vmatpush1.msra.mxu0 0.0
  %1205 = vmatprep.subr.mxu0 0.0
  %1206 = vmatpush1.msra.mxu0 0.0
  %1207 = vmatprep.subr.mxu0 0.0
  %1208 = vmatpush1.msra.mxu0 0.0
  %1209 = vmatprep.subr.mxu0 0.0
  %1210 = vmatpush1.msra.mxu0 0.0
  %1211 = vmatprep.subr.mxu0 0.0
  %1212 = vmatpush1.msra.mxu0 0.0
  %1213 = vmatprep.mubr.f32.mxu0 0.0
  %v1214 = vand.u32 %v52, 4294901760
  %1215 = vmatmul.mubr.f32.gmra.mrb[0].mxu0 %v1214
  %v1216 = vpop.f32.mrb[0].mxu0
  %v1217 = vadd.f32 %v1106, %v1216
  %v1218 = vpop.f32.mrb[0].mxu0
  %v1219 = vadd.f32 %v1108, %v1218
  %1220 = vmatprep.mubr.f32.mxu0 0.0
  %v1221 = vand.u32 %v55, 4294901760
  %1222 = vmatmul.mubr.f32.gmra.mrb[0].mxu0 %v1221
  %v1223 = vpop.f32.mrb[0].mxu0
  %v1224 = vadd.f32 %v1115, %v1223
  %v1225 = vpop.f32.mrb[0].mxu0
  %v1226 = vadd.f32 %v1117, %v1225
  %1227 = vmatprep.mubr.f32.mxu0 0.0
  %v1228 = vand.u32 %v58, 4294901760
  %1229 = vmatmul.mubr.f32.gmra.mrb[0].mxu0 %v1228
  %v1230 = vpop.f32.mrb[0].mxu0
  %v1231 = vadd.f32 %v1124, %v1230
  %v1232 = vpop.f32.mrb[0].mxu0
  %v1233 = vadd.f32 %v1126, %v1232
  %1234 = vmatprep.mubr.f32.mxu0 0.0
  %v1235 = vand.u32 %v61, 4294901760
  %1236 = vmatmul.mubr.f32.gmra.mrb[0].mxu0 %v1235
  %v1237 = vpop.f32.mrb[0].mxu0
  %v1238 = vadd.f32 %v1133, %v1237
  %v1239 = vpop.f32.mrb[0].mxu0
  %v1240 = vadd.f32 %v1135, %v1239
  %1241 = vdwg.mxu0
  %v1242 = vand.u32 %v21, 4294901760
  %1243 = vmatprep.subr.mxu0 %v1242
  %v1244 = vand.u32 %v20, 4294901760
  %1245 = vmatpush1.msra.mxu0 %v1244
  %v1246 = vand.u32 %v25, 4294901760
  %1247 = vmatprep.subr.mxu0 %v1246
  %v1248 = vand.u32 %v24, 4294901760
  %1249 = vmatpush1.msra.mxu0 %v1248
  %1250 = vmatprep.subr.mxu0 0.0
  %1251 = vmatpush1.msra.mxu0 0.0
  %1252 = vmatprep.subr.mxu0 0.0
  %1253 = vmatpush1.msra.mxu0 0.0
  %1254 = vmatprep.subr.mxu0 0.0
  %1255 = vmatpush1.msra.mxu0 0.0
  %1256 = vmatprep.subr.mxu0 0.0
  %1257 = vmatpush1.msra.mxu0 0.0
  %1258 = vmatprep.subr.mxu0 0.0
  %1259 = vmatpush1.msra.mxu0 0.0
  %1260 = vmatprep.subr.mxu0 0.0
  %1261 = vmatpush1.msra.mxu0 0.0
  %1262 = vmatprep.subr.mxu0 0.0
  %1263 = vmatpush1.msra.mxu0 0.0
  %1264 = vmatprep.subr.mxu0 0.0
  %1265 = vmatpush1.msra.mxu0 0.0
  %1266 = vmatprep.subr.mxu0 0.0
  %1267 = vmatpush1.msra.mxu0 0.0
  %1268 = vmatprep.subr.mxu0 0.0
  %1269 = vmatpush1.msra.mxu0 0.0
  %1270 = vmatprep.subr.mxu0 0.0
  %1271 = vmatpush1.msra.mxu0 0.0
  %1272 = vmatprep.subr.mxu0 0.0
  %1273 = vmatpush1.msra.mxu0 0.0
  %1274 = vmatprep.subr.mxu0 0.0
  %1275 = vmatpush1.msra.mxu0 0.0
  %1276 = vmatprep.subr.mxu0 0.0
  %1277 = vmatpush1.msra.mxu0 0.0
  %1278 = vmatprep.subr.mxu0 0.0
  %1279 = vmatpush1.msra.mxu0 0.0
  %1280 = vmatprep.subr.mxu0 0.0
  %1281 = vmatpush1.msra.mxu0 0.0
  %1282 = vmatprep.subr.mxu0 0.0
  %1283 = vmatpush1.msra.mxu0 0.0
  %1284 = vmatprep.subr.mxu0 0.0
  %1285 = vmatpush1.msra.mxu0 0.0
  %1286 = vmatprep.subr.mxu0 0.0
  %1287 = vmatpush1.msra.mxu0 0.0
  %1288 = vmatprep.subr.mxu0 0.0
  %1289 = vmatpush1.msra.mxu0 0.0
  %1290 = vmatprep.subr.mxu0 0.0
  %1291 = vmatpush1.msra.mxu0 0.0
  %1292 = vmatprep.subr.mxu0 0.0
  %1293 = vmatpush1.msra.mxu0 0.0
  %1294 = vmatprep.subr.mxu0 0.0
  %1295 = vmatpush1.msra.mxu0 0.0
  %1296 = vmatprep.subr.mxu0 0.0
  %1297 = vmatpush1.msra.mxu0 0.0
  %1298 = vmatprep.subr.mxu0 0.0
  %1299 = vmatpush1.msra.mxu0 0.0
  %1300 = vmatprep.subr.mxu0 0.0
  %1301 = vmatpush1.msra.mxu0 0.0
  %1302 = vmatprep.subr.mxu0 0.0
  %1303 = vmatpush1.msra.mxu0 0.0
  %1304 = vmatprep.subr.mxu0 0.0
  %1305 = vmatpush1.msra.mxu0 0.0
  %1306 = vmatprep.subr.mxu0 0.0
  %1307 = vmatpush1.msra.mxu0 0.0
  %1308 = vmatprep.subr.mxu0 0.0
  %1309 = vmatpush1.msra.mxu0 0.0
  %1310 = vmatprep.mubr.f32.mxu0 0.0
  %v1311 = vand.u32 %v52, 4294901760
  %1312 = vmatmul.mubr.f32.gmra.mrb[0].mxu0 %v1311
  %v1313 = vpop.f32.mrb[0].mxu0
  %v1314 = vadd.f32 %v1217, %v1313
  %v1315 = vpop.f32.mrb[0].mxu0
  %v1316 = vadd.f32 %v1219, %v1315
  %1317 = vmatprep.mubr.f32.mxu0 0.0
  %v1318 = vand.u32 %v55, 4294901760
  %1319 = vmatmul.mubr.f32.gmra.mrb[0].mxu0 %v1318
  %v1320 = vpop.f32.mrb[0].mxu0
  %v1321 = vadd.f32 %v1224, %v1320
  %v1322 = vpop.f32.mrb[0].mxu0
  %v1323 = vadd.f32 %v1226, %v1322
  %1324 = vmatprep.mubr.f32.mxu0 0.0
  %v1325 = vand.u32 %v58, 4294901760
  %1326 = vmatmul.mubr.f32.gmra.mrb[0].mxu0 %v1325
  %v1327 = vpop.f32.mrb[0].mxu0
  %v1328 = vadd.f32 %v1231, %v1327
  %v1329 = vpop.f32.mrb[0].mxu0
  %v1330 = vadd.f32 %v1233, %v1329
  %1331 = vmatprep.mubr.f32.mxu0 0.0
  %v1332 = vand.u32 %v61, 4294901760
  %1333 = vmatmul.mubr.f32.gmra.mrb[0].mxu0 %v1332
  %v1334 = vpop.f32.mrb[0].mxu0
  %v1335 = vadd.f32 %v1238, %v1334
  %v1336 = vpop.f32.mrb[0].mxu0
  %v1337 = vadd.f32 %v1240, %v1336
  %1338 = vdwg.mxu0
  %v1339 = vmax.f32 %v676, 0.0
  %v1340 = vmax.f32 %v678, 0.0
  %v1341 = vmax.f32 %v1314, 0.0
  %v1342 = vmax.f32 %v1316, 0.0
  %v1343 = vmax.f32 %v683, 0.0
  %v1344 = vmax.f32 %v685, 0.0
  %v1345 = vmax.f32 %v1321, 0.0
  %v1346 = vmax.f32 %v1323, 0.0
  %v1347 = vmax.f32 %v690, 0.0
  %v1348 = vmax.f32 %v692, 0.0
  %v1349 = vmax.f32 %v1328, 0.0
  %v1350 = vmax.f32 %v1330, 0.0
  %v1351 = vmax.f32 %v697, 0.0
  %v1352 = vmax.f32 %v699, 0.0
  %v1353 = vmax.f32 %v1335, 0.0
  %v1354 = vmax.f32 %v1337, 0.0
  %1355 = vst [vmem:[%s3] sm:$0xff] %v1339
  %1356 = vst [vmem:[%s3 + $0x8] sm:$0xff] %v1340
  %1357 = vst [vmem:[%s3 + $0x10] sm:$0xff] %v1341
  %1358 = vst [vmem:[%s3 + $0x18] sm:$0xff] %v1342
  %1359 = vst [vmem:[%s3 + $0x20] sm:$0xff] %v1343
  %1360 = vst [vmem:[%s3 + $0x28] sm:$0xff] %v1344
  %1361 = vst [vmem:[%s3 + $0x30] sm:$0xff] %v1345
  %1362 = vst [vmem:[%s3 + $0x38] sm:$0xff] %v1346
  %1363 = vst [vmem:[%s3 + $0x40] sm:$0xff] %v1347
  %1364 = vst [vmem:[%s3 + $0x48] sm:$0xff] %v1348
  %1365 = vst [vmem:[%s3 + $0x50] sm:$0xff] %v1349
  %1366 = vst [vmem:[%s3 + $0x58] sm:$0xff] %v1350
  %1367 = vst [vmem:[%s3 + $0x60] sm:$0xff] %v1351
  %1368 = vst [vmem:[%s3 + $0x68] sm:$0xff] %v1352
  %1369 = vst [vmem:[%s3 + $0x70] sm:$0xff] %v1353
  %1370 = vst [vmem:[%s3 + $0x78] sm:$0xff] %v1354
  // Predicated region
  $region14: #{layer_conv_transpose_forward.1} parent=0 // pred_check
    _
  $region15: #{layer_conv_transpose_forward.1} parent=0 // pred_check_branch
    %1372 = sbr.rel (0) target = $region17
  $region16: #{layer_conv_transpose_forward.1} parent=0 // pred_region
    _
  $region17: #{layer_conv_transpose_forward.1} parent=0 // pred_fallthru
    _
  // Predicated region
  $region18: #{layer_conv_transpose_forward.1} parent=0 // pred_check
    _
  $region19: #{layer_conv_transpose_forward.1} parent=0 // pred_check_branch
    %1374 = sbr.rel (0) target = $region21
  $region20: #{layer_conv_transpose_forward.1} parent=0 // pred_region
    _
  $region21: #{layer_conv_transpose_forward.1} parent=0 // pred_fallthru
    _

</llo_original>
